<compile_context>
chip_gen: v5e
topology: v5e:2x2
jax: 0.10.0
libtpu: 0.0.40
codegen_flags: <defaults>
</compile_context>

<pallas_src>
import functools

import jax
import jax.numpy as jnp
from jax.experimental import pallas as pl
from jax.experimental.pallas import tpu as pltpu


def _round_up(v, m):
    return ((v + m - 1) // m) * m


def _gcn_kernel_fused(mask_ref, lap_ref, x_ref, w_ref, b_ref, o_ref, acc_ref,
                      *, activation):
    """acc = sum_k lap(i,k) @ X(k);  out(i) = act(acc @ W + b)."""
    i = pl.program_id(0)
    k = pl.program_id(1)

    @pl.when(k == 0)
    def _():
        acc_ref[...] = jnp.zeros_like(acc_ref)

    @pl.when(mask_ref[i, k] != 0)
    def _():
        acc_ref[...] += jnp.dot(lap_ref[...], x_ref[...],
                                preferred_element_type=jnp.float32)

    @pl.when(k == pl.num_programs(1) - 1)
    def _():
        z = jnp.dot(acc_ref[...], w_ref[...],
                    preferred_element_type=jnp.float32) + b_ref[...]
        o_ref[...] = activation(z).astype(o_ref.dtype)


def _gcn_kernel_prefolded(mask_ref, lap_ref, xw_ref, b_ref, o_ref,
                          *, activation):
    """X@W^T was folded in the wrapper; accumulate straight into the resident
    output block:  out(i) = act(sum_k lap(i,k) @ XW(k) + b)."""
    i = pl.program_id(0)
    k = pl.program_id(1)

    @pl.when(k == 0)
    def _():
        o_ref[...] = jnp.zeros_like(o_ref)

    @pl.when(mask_ref[i, k] != 0)
    def _():
        o_ref[...] += jnp.dot(lap_ref[...], xw_ref[...],
                              preferred_element_type=jnp.float32)

    @pl.when(k == pl.num_programs(1) - 1)
    def _():
        o_ref[...] = activation(o_ref[...] + b_ref[...]).astype(o_ref.dtype)


def gcn_layer_forward(norm_lap, x, weight, bias, activation=lambda z: z,
                      compute_dtype=jnp.float32, max_tile=512):
    """GCN layer forward.

    norm_lap: (N, N), x: (N, Fin), weight: (Fout, Fin), bias: (Fout,).
    compute_dtype: dtype of the Laplacian / feature tiles fed to the MXU
        (f32 or bf16; accumulation is always f32).
    max_tile: tile cap (multiple of 128).  512 fits comfortably on every
        generation incl. v7x's 64 MiB VMEM; v6e (128 MiB) tolerates 1024-2048.
    """
    n, fin = x.shape
    fout = weight.shape[0]

    fin_pad = _round_up(fin, 128)
    fout_pad = _round_up(fout, 128)

    # Tile size: multiple of 128 on both MXU dims, divides the padded N.
    tile = min(max_tile, _round_up(n, 128))
    n_pad = _round_up(n, tile)
    gm = n_pad // tile
    gk = n_pad // tile

    # Zero-padded Laplacian (cast at the boundary; bf16 halves the dominant
    # HBM traffic, accumulation stays f32 inside the kernel).
    lap_p = jnp.pad(norm_lap.astype(compute_dtype),
                    ((0, n_pad - n), (0, n_pad - n)))

    # Per-(i, k)-tile nonzero mask, scalar-prefetched into SMEM: all-zero
    # Laplacian tiles skip the MXU accumulation entirely.
    mask = jnp.any((lap_p != 0).reshape(gm, tile, gk, tile),
                   axis=(1, 3)).astype(jnp.int32)

    b_p = jnp.pad(bias.astype(jnp.float32), (0, fout_pad - fout)).reshape(1, fout_pad)

    use_prefold = fout_pad < fin_pad
    if use_prefold:
        # Fold the tiny X @ W^T in the wrapper so the big O(N^2) matmul
        # contracts the smaller (padded) feature dimension.
        feats = jnp.dot(x.astype(jnp.float32), weight.T.astype(jnp.float32),
                        precision=jax.lax.Precision.HIGHEST)
        kdim = fout_pad
        feats_p = jnp.pad(feats.astype(compute_dtype),
                          ((0, n_pad - n), (0, kdim - fout)))
        kernel = functools.partial(_gcn_kernel_prefolded, activation=activation)
        extra_inputs = []
        extra_specs = []
        scratch_shapes = []
        resident_w_bytes = 0
        acc_bytes = 0
    else:
        kdim = fin_pad
        feats_p = jnp.pad(x.astype(compute_dtype),
                          ((0, n_pad - n), (0, kdim - fin)))
        w_p = jnp.pad(weight.T.astype(jnp.float32),
                      ((0, fin_pad - fin), (0, fout_pad - fout)))
        kernel = functools.partial(_gcn_kernel_fused, activation=activation)
        extra_inputs = [w_p]
        # W is tiny and reused by every tile: constant index_map -> resident.
        extra_specs = [pl.BlockSpec((fin_pad, fout_pad), lambda i, k, m: (0, 0))]
        scratch_shapes = [pltpu.VMEM((tile, kdim), jnp.float32)]
        resident_w_bytes = fin_pad * fout_pad * 4
        acc_bytes = tile * kdim * 4

    in_specs = [
        pl.BlockSpec((tile, tile), lambda i, k, m: (i, k)),   # Laplacian tile
        pl.BlockSpec((tile, kdim), lambda i, k, m: (k, 0)),   # feature tile
        *extra_specs,                                         # resident W (fused path)
        pl.BlockSpec((1, fout_pad), lambda i, k, m: (0, 0)),  # resident bias
    ]
    out_spec = pl.BlockSpec((tile, fout_pad), lambda i, k, m: (i, 0))

    # VMEM budget: double-buffered lap/feat tiles + resident out/W/b (+ acc).
    in_bytes = jnp.dtype(compute_dtype).itemsize
    vmem_need = (2 * tile * tile * in_bytes      # Laplacian tiles (double-buffered)
                 + 2 * tile * kdim * in_bytes    # feature tiles  (double-buffered)
                 + 2 * tile * fout_pad * 4       # output block
                 + resident_w_bytes              # resident W (fused path)
                 + 2 * fout_pad * 4              # resident bias
                 + acc_bytes)                    # f32 accumulator (fused path)
    vmem_limit = int(min(100 * 2**20, max(32 * 2**20, 2 * vmem_need)))

    out_p = pl.pallas_call(
        kernel,
        out_shape=jax.ShapeDtypeStruct((n_pad, fout_pad), jnp.float32),
        grid_spec=pltpu.PrefetchScalarGridSpec(
            num_scalar_prefetch=1,
            grid=(gm, gk),
            in_specs=in_specs,
            out_specs=out_spec,
            scratch_shapes=scratch_shapes,
        ),
        compiler_params=pltpu.CompilerParams(
            dimension_semantics=("parallel", "arbitrary"),
            vmem_limit_bytes=vmem_limit,
        ),
    )(mask, lap_p, feats_p, *extra_inputs, b_p)

    return out_p[:n, :fout]


def build_norm_laplacian(adj_mat):
    """D^{-1/2} A D^{-1/2} + I, exactly as the module's __init__ does (glue).

    Note: like the PyTorch module, degree-0 (isolated) nodes yield inf here.
    """
    deg = jnp.power(jnp.sum(adj_mat, axis=0), -0.5)
    deg_mat = jnp.diag(deg)
    identity = jnp.eye(adj_mat.shape[0], dtype=adj_mat.dtype)
    return deg_mat @ adj_mat @ deg_mat + identity


if __name__ == "__main__":
    def ring_adjacency(num_nodes):
        idx = jnp.arange(num_nodes)
        adj = jnp.zeros((num_nodes, num_nodes), jnp.float32)
        adj = adj.at[idx, (idx + 1) % num_nodes].set(1.0)
        adj = adj.at[(idx + 1) % num_nodes, idx].set(1.0)
        return adj

    def reference(norm_lap, x, w, b, act):
        hp = jax.lax.Precision.HIGHEST
        z = jnp.dot(norm_lap, x, precision=hp)
        z = jnp.dot(z, w.T, precision=hp) + b
        return act(z)

    def make_case(case_key, num_nodes, in_feats, out_feats):
        k_x, k_w, k_b = jax.random.split(case_key, 3)
        lap = build_norm_laplacian(ring_adjacency(num_nodes))
        x = jax.random.normal(k_x, (num_nodes, in_feats), jnp.float32)
        # nn.init.uniform_ on weight; PyTorch-default bias init.
        w = jax.random.uniform(k_w, (out_feats, in_feats), jnp.float32)
        bound = 1.0 / float(in_feats) ** 0.5
        b = jax.random.uniform(k_b, (out_feats,), jnp.float32,
                               minval=-bound, maxval=bound)
        return lap, x, w, b

    identity = lambda z: z
    key = jax.random.PRNGKey(0)
    k1, k2, k3 = jax.random.split(key, 3)

    # Case 1: small single-tile problem, identity activation (module default), f32.
    lap, x, w, b = make_case(k1, 16, 8, 32)
    out = jax.block_until_ready(gcn_layer_forward(lap, x, w, b, identity))
    ref = reference(lap, x, w, b, identity)
    assert out.shape == (16, 32)
    assert jnp.allclose(out, ref, atol=1e-3, rtol=1e-3), "case1 mismatch"

    # Case 1b: bf16 inputs / f32 accumulation (HBM-bandwidth optimization path).
    out_bf16 = jax.block_until_ready(
        gcn_layer_forward(lap, x, w, b, identity, compute_dtype=jnp.bfloat16))
    assert jnp.allclose(out_bf16, ref, atol=5e-2, rtol=5e-2), "case1 bf16 mismatch"

    # Case 2: multi-tile grid (3x3 reduction over k) + ReLU activation.
    lap, x, w, b = make_case(k2, 300, 8, 32)
    out = jax.block_until_ready(
        gcn_layer_forward(lap, x, w, b, jax.nn.relu, max_tile=128))
    ref = reference(lap, x, w, b, jax.nn.relu)
    assert out.shape == (300, 32)
    assert jnp.allclose(out, ref, atol=1e-3, rtol=1e-3), "case2 mismatch"

    # Case 3: Fout_pad < Fin_pad -> contraction-order switch (X @ W^T prefolded,
    # accumulation lands directly in the resident output block).
    lap, x, w, b = make_case(k3, 64, 200, 32)
    out = jax.block_until_ready(gcn_layer_forward(lap, x, w, b, identity))
    ref = reference(lap, x, w, b, identity)
    assert out.shape == (64, 32)
    assert jnp.allclose(out, ref, atol=1e-3, rtol=1e-3), "case3 mismatch"

    print("KERNEL_OK")
</pallas_src>

<mosaic_0001>
module attributes {stable_mosaic.version = 11 : i64} {
  func.func @_gcn_kernel_fused(%arg0: i32, %arg1: i32, %arg2: memref<1x1xi32, #tpu.memory_space<smem>>, %arg3: memref<128x128xf32, #tpu.memory_space<vmem>>, %arg4: memref<128x128xf32, #tpu.memory_space<vmem>>, %arg5: memref<128x128xf32, #tpu.memory_space<vmem>>, %arg6: memref<1x128xf32, #tpu.memory_space<vmem>>, %arg7: memref<128x128xf32, #tpu.memory_space<vmem>>, %arg8: memref<128x128xf32, #tpu.memory_space<vmem>>) attributes {dimension_semantics = [#tpu.dimension_semantics<parallel>, #tpu.dimension_semantics<arbitrary>], iteration_bounds = array<i64: 1, 1>, scalar_prefetch = 1 : i64, scratch_operands = 1 : i64, tpu.core_type = #tpu.core_type<tc>, window_params = [{transform_indices = @transform_0, window_bounds = array<i64: 128, 128>}, {transform_indices = @transform_1, window_bounds = array<i64: 128, 128>}, {pipeline_mode = #tpu.pipeline_mode<synchronous>, transform_indices = @transform_2, window_bounds = array<i64: 128, 128>}, {pipeline_mode = #tpu.pipeline_mode<synchronous>, transform_indices = @transform_3, window_bounds = array<i64: 1, 128>}, {transform_indices = @transform_4, window_bounds = array<i64: 128, 128>}]} {
    %c0_i32 = arith.constant 0 : i32
    %0 = arith.cmpi eq, %arg1, %c0_i32 : i32
    %1 = arith.extui %0 : i1 to i32
    %c0_i32_0 = arith.constant 0 : i32
    %2 = arith.cmpi ne, %1, %c0_i32_0 : i32
    scf.if %2 {
      %cst = arith.constant 0.000000e+00 : f32
      %12 = vector.broadcast %cst : f32 to vector<128x128xf32>
      %c0 = arith.constant 0 : index
      %c0_5 = arith.constant 0 : index
      %13 = vector.load %arg8[%c0, %c0_5] : memref<128x128xf32, #tpu.memory_space<vmem>>, vector<128x128xf32>
      tpu.vector_store %arg8[%c0, %c0_5], %12 {strides = array<i32>} : memref<128x128xf32, #tpu.memory_space<vmem>>, vector<128x128xf32>,
    } else {
    }
    %3 = arith.index_cast %arg0 : i32 to index
    %4 = arith.index_cast %arg1 : i32 to index
    %5 = memref.load %arg2[%3, %4] : memref<1x1xi32, #tpu.memory_space<smem>>
    %c0_i32_1 = arith.constant 0 : i32
    %6 = arith.cmpi ne, %5, %c0_i32_1 : i32
    %7 = arith.extui %6 : i1 to i32
    %c0_i32_2 = arith.constant 0 : i32
    %8 = arith.cmpi ne, %7, %c0_i32_2 : i32
    scf.if %8 {
      %c0 = arith.constant 0 : index
      %c0_5 = arith.constant 0 : index
      %12 = vector.load %arg8[%c0, %c0_5] : memref<128x128xf32, #tpu.memory_space<vmem>>, vector<128x128xf32>
      %c0_6 = arith.constant 0 : index
      %c0_7 = arith.constant 0 : index
      %13 = vector.load %arg3[%c0_6, %c0_7] : memref<128x128xf32, #tpu.memory_space<vmem>>, vector<128x128xf32>
      %c0_8 = arith.constant 0 : index
      %c0_9 = arith.constant 0 : index
      %14 = vector.load %arg4[%c0_8, %c0_9] : memref<128x128xf32, #tpu.memory_space<vmem>>, vector<128x128xf32>
      %cst = arith.constant dense<0.000000e+00> : vector<128x128xf32>
      %15 = tpu.matmul %13, %14, %cst {dimension_numbers = #tpu.dot_dimension_numbers<[1], [0], [0], [1], [0, 0, 1, 1], [], []>} : vector<128x128xf32>, vector<128x128xf32>, vector<128x128xf32> -> vector<128x128xf32>
      %16 = arith.addf %12, %15 : vector<128x128xf32>
      %c0_10 = arith.constant 0 : index
      %c0_11 = arith.constant 0 : index
      %17 = vector.load %arg8[%c0_10, %c0_11] : memref<128x128xf32, #tpu.memory_space<vmem>>, vector<128x128xf32>
      tpu.vector_store %arg8[%c0_10, %c0_11], %16 {strides = array<i32>} : memref<128x128xf32, #tpu.memory_space<vmem>>, vector<128x128xf32>,
    } else {
    }
    %c0_i32_3 = arith.constant 0 : i32
    %9 = arith.cmpi eq, %arg1, %c0_i32_3 : i32
    %10 = arith.extui %9 : i1 to i32
    %c0_i32_4 = arith.constant 0 : i32
    %11 = arith.cmpi ne, %10, %c0_i32_4 : i32
    scf.if %11 {
      %c0 = arith.constant 0 : index
      %c0_5 = arith.constant 0 : index
      %12 = vector.load %arg8[%c0, %c0_5] : memref<128x128xf32, #tpu.memory_space<vmem>>, vector<128x128xf32>
      %c0_6 = arith.constant 0 : index
      %c0_7 = arith.constant 0 : index
      %13 = vector.load %arg5[%c0_6, %c0_7] : memref<128x128xf32, #tpu.memory_space<vmem>>, vector<128x128xf32>
      %cst = arith.constant dense<0.000000e+00> : vector<128x128xf32>
      %14 = tpu.matmul %12, %13, %cst {dimension_numbers = #tpu.dot_dimension_numbers<[1], [0], [0], [1], [0, 0, 1, 1], [], []>} : vector<128x128xf32>, vector<128x128xf32>, vector<128x128xf32> -> vector<128x128xf32>
      %c0_8 = arith.constant 0 : index
      %c0_9 = arith.constant 0 : index
      %15 = vector.load %arg6[%c0_8, %c0_9] : memref<1x128xf32, #tpu.memory_space<vmem>>, vector<1x128xf32>
      %16 = vector.broadcast %15 : vector<1x128xf32> to vector<128x128xf32>
      %17 = arith.addf %14, %16 : vector<128x128xf32>
      %c0_10 = arith.constant 0 : index
      %c0_11 = arith.constant 0 : index
      %18 = vector.load %arg7[%c0_10, %c0_11] : memref<128x128xf32, #tpu.memory_space<vmem>>, vector<128x128xf32>
      tpu.vector_store %arg7[%c0_10, %c0_11], %17 {strides = array<i32>} : memref<128x128xf32, #tpu.memory_space<vmem>>, vector<128x128xf32>,
    } else {
    }
    return
  }
  func.func @transform_0(%arg0: i32, %arg1: i32, %arg2: memref<1x1xi32, #tpu.memory_space<smem>>) -> (i32, i32) {
    %c0_i32 = arith.constant 0 : i32
    return %arg0, %arg1 : i32, i32
  }
  func.func @transform_1(%arg0: i32, %arg1: i32, %arg2: memref<1x1xi32, #tpu.memory_space<smem>>) -> (i32, i32) {
    %c0_i32 = arith.constant 0 : i32
    %c0_i32_0 = arith.constant 0 : i32
    return %arg1, %c0_i32 : i32, i32
  }
  func.func @transform_2(%arg0: i32, %arg1: i32, %arg2: memref<1x1xi32, #tpu.memory_space<smem>>) -> (i32, i32) {
    %c0_i32 = arith.constant 0 : i32
    %c0_i32_0 = arith.constant 0 : i32
    %c0_i32_1 = arith.constant 0 : i32
    return %c0_i32, %c0_i32_0 : i32, i32
  }
  func.func @transform_3(%arg0: i32, %arg1: i32, %arg2: memref<1x1xi32, #tpu.memory_space<smem>>) -> (i32, i32) {
    %c0_i32 = arith.constant 0 : i32
    %c0_i32_0 = arith.constant 0 : i32
    %c0_i32_1 = arith.constant 0 : i32
    return %c0_i32, %c0_i32_0 : i32, i32
  }
  func.func @transform_4(%arg0: i32, %arg1: i32, %arg2: memref<1x1xi32, #tpu.memory_space<smem>>) -> (i32, i32) {
    %c0_i32 = arith.constant 0 : i32
    %c0_i32_0 = arith.constant 0 : i32
    return %arg0, %c0_i32 : i32, i32
  }
}

</mosaic_0001>

<llo_original>
// kernel: tpu_custom_call.1
$region0: #{tpu_custom_call.1}
  #allocation0 [shape = 'u32[]', space=smem, size = 0x4, offset = 0x4, fixed_abs, tag = 'smem constant byte address 0x4 - core index']
  #allocation1 [shape = 'u32[72,128]{1,0:T(1,128)}', space=vmem, size = 0x9000, scoped, tag = 'internal scratch']
  #allocation2 [shape = 'f32[128,128]{1,0:T(8,128)}', space=vmem, size = 0x10000, scoped, tag = 'scratch operand']
  #allocation3 [shape = 's32[1]{0}', space=sflag, size = 0x4, scoped, tag = 'scoped memory for tpu_custom_call.1']
  #allocation4 [shape = 's32[1,1]{1,0:T(1,128)S(6)}', space=smem, size = 0x200, scoped, tag = 'prefetched SMEM operand 0']
  %s0 = inlined_call_operand.<no memory space> [shape: s32[1,1], index: 0, kind: input, shape index: {}]
  %s1 = inlined_call_operand.hbm [shape: f32[128,128], index: 1, kind: input, shape index: {}]
  %s2 = inlined_call_operand.hbm [shape: f32[128,128], index: 2, kind: input, shape index: {}]
  %s3 = inlined_call_operand.hbm [shape: f32[128,128], index: 3, kind: input, shape index: {}]
  %s4 = inlined_call_operand.vmem [shape: f32[1,128], index: 4, kind: input, shape index: {}]
  %s5 = inlined_call_operand.hbm [shape: f32[128,128], index: 5, kind: output, shape index: {}]
  %s6 = sld [smem:[#allocation0]]
  $region50: #{tpu_custom_call.1} parent=0
    _
  %s8 = ssub.s32 1, %s6
  %s9 = scalar_select 0, %s8, %s6
  %10 = sst [smem:[#allocation4]] %s0
  $region1: #{tpu_custom_call.1} parent=0
    #allocation5 [shape = 'u8[65536]{0}', space=vmem, size = 0x10000, scoped, tag = 'input window, operand 1, single buffered']
    #allocation6 [shape = 's32[1]{0}', space=sflag, size = 0x4, scoped, tag = 'scoped memory for tpu_custom_call.1']
    #allocation7 [shape = 's32[1]{0}', space=sflag, size = 0x4, scoped, tag = 'scoped memory for tpu_custom_call.1']
    #allocation8 [shape = 'u8[65536]{0}', space=vmem, size = 0x10000, scoped, tag = 'input window, operand 2, single buffered']
    #allocation9 [shape = 's32[1]{0}', space=sflag, size = 0x4, scoped, tag = 'scoped memory for tpu_custom_call.1']
    #allocation10 [shape = 'u8[65536]{0}', space=vmem, size = 0x10000, scoped, tag = 'input window, operand 3, single buffered']
    #allocation11 [shape = 'u8[65536]{0}', space=vmem, size = 0x10000, scoped, tag = 'output window, operand 0, single buffered']
    %11 = vsyncpa [#allocation6], 0
    %12 = vsyncpa [#allocation9], 0
    %13 = vsyncpa [#allocation7], 0
    // Predicated region
    $region2: #{tpu_custom_call.1} parent=1 // pred_check
      _
    $region3: #{tpu_custom_call.1} parent=1 // pred_check_branch
      %15 = sbr.rel (0) target = $region5
    $region4: #{tpu_custom_call.1} parent=1 // pred_region
      %17 = vsyncadd [#allocation6], 0
      %s18 = sshll.u32 %s1, 4
      %s19 = int_to_ptr.hbm [resolvable:$true] %s18
      %s20 = sshll.u32 [#allocation5], 4
      %s21 = int_to_ptr.vmem [resolvable:$true] %s20
      %26 = dma.hbm_to_vmem [thread:$0]  %s19, 2048, %s21, [#allocation6], 128, 128, 8
    $region5: #{tpu_custom_call.1} parent=1 // pred_fallthru
      _
    // Predicated region
    $region6: #{tpu_custom_call.1} parent=1 // pred_check
      _
    $region7: #{tpu_custom_call.1} parent=1 // pred_check_branch
      %28 = sbr.rel (0) target = $region9
    $region8: #{tpu_custom_call.1} parent=1 // pred_region
      %30 = vsyncadd [#allocation9], 0
      %s31 = sshll.u32 %s2, 4
      %s32 = int_to_ptr.hbm [resolvable:$true] %s31
      %s33 = sshll.u32 [#allocation8], 4
      %s34 = int_to_ptr.vmem [resolvable:$true] %s33
      %39 = dma.hbm_to_vmem [thread:$0]  %s32, 2048, %s34, [#allocation9], 128, 128, 8
    $region9: #{tpu_custom_call.1} parent=1 // pred_fallthru
      _
    // Predicated region
    $region10: #{tpu_custom_call.1} parent=1 // pred_check
      _
    $region11: #{tpu_custom_call.1} parent=1 // pred_check_branch
      %41 = sbr.rel (0) target = $region13
    $region12: #{tpu_custom_call.1} parent=1 // pred_region
      %43 = vsyncadd [#allocation9], 0
      %s44 = sshll.u32 %s3, 4
      %s45 = int_to_ptr.hbm [resolvable:$true] %s44
      %s46 = sshll.u32 [#allocation10], 4
      %s47 = int_to_ptr.vmem [resolvable:$true] %s46
      %52 = dma.hbm_to_vmem [thread:$0]  %s45, 2048, %s47, [#allocation9], 128, 128, 8
    $region13: #{tpu_custom_call.1} parent=1 // pred_fallthru
      _
    // Predicated region
    $region14: #{tpu_custom_call.1} parent=1 // pred_check
      _
    $region15: #{tpu_custom_call.1} parent=1 // pred_check_branch
      %54 = sbr.rel (0) target = $region17
    $region16: #{tpu_custom_call.1} parent=1 // pred_region
      _
    $region17: #{tpu_custom_call.1} parent=1 // pred_fallthru
      _
    // Predicated region
    $region18: #{tpu_custom_call.1} parent=1 // pred_check
      _
    $region19: #{tpu_custom_call.1} parent=1 // pred_check_branch
      %56 = sbr.rel (0) target = $region21
    $region20: #{tpu_custom_call.1} parent=1 // pred_region
      %58 = dma.done [#allocation6], 2048
    $region21: #{tpu_custom_call.1} parent=1 // pred_fallthru
      _
    // Predicated region
    $region22: #{tpu_custom_call.1} parent=1 // pred_check
      _
    $region23: #{tpu_custom_call.1} parent=1 // pred_check_branch
      %60 = sbr.rel (0) target = $region25
    $region24: #{tpu_custom_call.1} parent=1 // pred_region
      %62 = dma.done [#allocation9], 2048
    $region25: #{tpu_custom_call.1} parent=1 // pred_fallthru
      _
    // Predicated region
    $region26: #{tpu_custom_call.1} parent=1 // pred_check
      _
    $region27: #{tpu_custom_call.1} parent=1 // pred_check_branch
      %64 = sbr.rel (0) target = $region29
    $region28: #{tpu_custom_call.1} parent=1 // pred_region
      %66 = dma.done [#allocation9], 2048
    $region29: #{tpu_custom_call.1} parent=1 // pred_fallthru
      _
    %p67 = scmp.eq.s32.totalorder 0, 0
    // Predicated region
    $region30: #{tpu_custom_call.1} parent=1 // pred_check
      %p68 = pneg %p67
    $region31: #{tpu_custom_call.1} parent=1 // pred_check_branch
      %70 = sbr.rel (%p68) target = $region33
    $region32: #{tpu_custom_call.1} parent=1 // pred_region
      %71 = vst [vmem:[#allocation2] sm:$0xff] 0.0
      %72 = vst [vmem:[#allocation2 + $0x8] sm:$0xff] 0.0
      %73 = vst [vmem:[#allocation2 + $0x10] sm:$0xff] 0.0
      %74 = vst [vmem:[#allocation2 + $0x18] sm:$0xff] 0.0
      %75 = vst [vmem:[#allocation2 + $0x20] sm:$0xff] 0.0
      %76 = vst [vmem:[#allocation2 + $0x28] sm:$0xff] 0.0
      %77 = vst [vmem:[#allocation2 + $0x30] sm:$0xff] 0.0
      %78 = vst [vmem:[#allocation2 + $0x38] sm:$0xff] 0.0
      %79 = vst [vmem:[#allocation2 + $0x40] sm:$0xff] 0.0
      %80 = vst [vmem:[#allocation2 + $0x48] sm:$0xff] 0.0
      %81 = vst [vmem:[#allocation2 + $0x50] sm:$0xff] 0.0
      %82 = vst [vmem:[#allocation2 + $0x58] sm:$0xff] 0.0
      %83 = vst [vmem:[#allocation2 + $0x60] sm:$0xff] 0.0
      %84 = vst [vmem:[#allocation2 + $0x68] sm:$0xff] 0.0
      %85 = vst [vmem:[#allocation2 + $0x70] sm:$0xff] 0.0
      %86 = vst [vmem:[#allocation2 + $0x78] sm:$0xff] 0.0
    $region33: #{tpu_custom_call.1} parent=1 // pred_fallthru
      _
    %s87 = sadd.s32 0, 0
    %s88 = smul.u32 %s87, 128
    %s89 = sadd.s32 %s88, 0
    %s90 = sld [smem:[#allocation4 + %s89]]
    %p91 = scmp.ne.s32.totalorder %s90, 0
    // Predicated region
    $region34: #{tpu_custom_call.1} parent=1 // pred_check
      %p92 = pneg %p91
    $region35: #{tpu_custom_call.1} parent=1 // pred_check_branch
      %94 = sbr.rel (%p92) target = $region37
    $region36: #{tpu_custom_call.1} parent=1 // pred_region
      %v95 = vld [vmem:[#allocation2] sm:$0xff]
      %v96 = vld [vmem:[#allocation2 + $0x8] sm:$0xff]
      %v97 = vld [vmem:[#allocation2 + $0x10] sm:$0xff]
      %v98 = vld [vmem:[#allocation2 + $0x18] sm:$0xff]
      %v99 = vld [vmem:[#allocation2 + $0x20] sm:$0xff]
      %v100 = vld [vmem:[#allocation2 + $0x28] sm:$0xff]
      %v101 = vld [vmem:[#allocation2 + $0x30] sm:$0xff]
      %v102 = vld [vmem:[#allocation2 + $0x38] sm:$0xff]
      %v103 = vld [vmem:[#allocation2 + $0x40] sm:$0xff]
      %v104 = vld [vmem:[#allocation2 + $0x48] sm:$0xff]
      %v105 = vld [vmem:[#allocation2 + $0x50] sm:$0xff]
      %v106 = vld [vmem:[#allocation2 + $0x58] sm:$0xff]
      %v107 = vld [vmem:[#allocation2 + $0x60] sm:$0xff]
      %v108 = vld [vmem:[#allocation2 + $0x68] sm:$0xff]
      %v109 = vld [vmem:[#allocation2 + $0x70] sm:$0xff]
      %v110 = vld [vmem:[#allocation2 + $0x78] sm:$0xff]
      %v111 = vld [vmem:[#allocation5] sm:$0xff]
      %v112 = vld [vmem:[#allocation5 + $0x8] sm:$0xff]
      %v113 = vld [vmem:[#allocation5 + $0x10] sm:$0xff]
      %v114 = vld [vmem:[#allocation5 + $0x18] sm:$0xff]
      %v115 = vld [vmem:[#allocation5 + $0x20] sm:$0xff]
      %v116 = vld [vmem:[#allocation5 + $0x28] sm:$0xff]
      %v117 = vld [vmem:[#allocation5 + $0x30] sm:$0xff]
      %v118 = vld [vmem:[#allocation5 + $0x38] sm:$0xff]
      %v119 = vld [vmem:[#allocation5 + $0x40] sm:$0xff]
      %v120 = vld [vmem:[#allocation5 + $0x48] sm:$0xff]
      %v121 = vld [vmem:[#allocation5 + $0x50] sm:$0xff]
      %v122 = vld [vmem:[#allocation5 + $0x58] sm:$0xff]
      %v123 = vld [vmem:[#allocation5 + $0x60] sm:$0xff]
      %v124 = vld [vmem:[#allocation5 + $0x68] sm:$0xff]
      %v125 = vld [vmem:[#allocation5 + $0x70] sm:$0xff]
      %v126 = vld [vmem:[#allocation5 + $0x78] sm:$0xff]
      %v127 = vld [vmem:[#allocation8] sm:$0xff]
      %v128 = vld [vmem:[#allocation8 + $0x8] sm:$0xff]
      %v129 = vld [vmem:[#allocation8 + $0x10] sm:$0xff]
      %v130 = vld [vmem:[#allocation8 + $0x18] sm:$0xff]
      %v131 = vld [vmem:[#allocation8 + $0x20] sm:$0xff]
      %v132 = vld [vmem:[#allocation8 + $0x28] sm:$0xff]
      %v133 = vld [vmem:[#allocation8 + $0x30] sm:$0xff]
      %v134 = vld [vmem:[#allocation8 + $0x38] sm:$0xff]
      %v135 = vld [vmem:[#allocation8 + $0x40] sm:$0xff]
      %v136 = vld [vmem:[#allocation8 + $0x48] sm:$0xff]
      %v137 = vld [vmem:[#allocation8 + $0x50] sm:$0xff]
      %v138 = vld [vmem:[#allocation8 + $0x58] sm:$0xff]
      %v139 = vld [vmem:[#allocation8 + $0x60] sm:$0xff]
      %v140 = vld [vmem:[#allocation8 + $0x68] sm:$0xff]
      %v141 = vld [vmem:[#allocation8 + $0x70] sm:$0xff]
      %v142 = vld [vmem:[#allocation8 + $0x78] sm:$0xff]
      %143 = vmatpush.msra.mxu0 %v142
      %144 = vmatpush.msra.mxu0 %v141
      %145 = vmatpush.msra.mxu0 %v140
      %146 = vmatpush.msra.mxu0 %v139
      %147 = vmatpush.msra.mxu0 %v138
      %148 = vmatpush.msra.mxu0 %v137
      %149 = vmatpush.msra.mxu0 %v136
      %150 = vmatpush.msra.mxu0 %v135
      %151 = vmatpush.msra.mxu0 %v134
      %152 = vmatpush.msra.mxu0 %v133
      %153 = vmatpush.msra.mxu0 %v132
      %154 = vmatpush.msra.mxu0 %v131
      %155 = vmatpush.msra.mxu0 %v130
      %156 = vmatpush.msra.mxu0 %v129
      %157 = vmatpush.msra.mxu0 %v128
      %158 = vmatpush.msra.mxu0 %v127
      %159 = vmatmul.f32.gmra.mxu0 %v111
      %v160 = vpop.f32.mrf.mxu0
      %v161 = vadd.f32 0.0, %v160
      %162 = vmatmul.f32.gmra.mxu0 %v112
      %v163 = vpop.f32.mrf.mxu0
      %v164 = vadd.f32 0.0, %v163
      %165 = vmatmul.f32.gmra.mxu0 %v113
      %v166 = vpop.f32.mrf.mxu0
      %v167 = vadd.f32 0.0, %v166
      %168 = vmatmul.f32.gmra.mxu0 %v114
      %v169 = vpop.f32.mrf.mxu0
      %v170 = vadd.f32 0.0, %v169
      %171 = vmatmul.f32.gmra.mxu0 %v115
      %v172 = vpop.f32.mrf.mxu0
      %v173 = vadd.f32 0.0, %v172
      %174 = vmatmul.f32.gmra.mxu0 %v116
      %v175 = vpop.f32.mrf.mxu0
      %v176 = vadd.f32 0.0, %v175
      %177 = vmatmul.f32.gmra.mxu0 %v117
      %v178 = vpop.f32.mrf.mxu0
      %v179 = vadd.f32 0.0, %v178
      %180 = vmatmul.f32.gmra.mxu0 %v118
      %v181 = vpop.f32.mrf.mxu0
      %v182 = vadd.f32 0.0, %v181
      %183 = vmatmul.f32.gmra.mxu0 %v119
      %v184 = vpop.f32.mrf.mxu0
      %v185 = vadd.f32 0.0, %v184
      %186 = vmatmul.f32.gmra.mxu0 %v120
      %v187 = vpop.f32.mrf.mxu0
      %v188 = vadd.f32 0.0, %v187
      %189 = vmatmul.f32.gmra.mxu0 %v121
      %v190 = vpop.f32.mrf.mxu0
      %v191 = vadd.f32 0.0, %v190
      %192 = vmatmul.f32.gmra.mxu0 %v122
      %v193 = vpop.f32.mrf.mxu0
      %v194 = vadd.f32 0.0, %v193
      %195 = vmatmul.f32.gmra.mxu0 %v123
      %v196 = vpop.f32.mrf.mxu0
      %v197 = vadd.f32 0.0, %v196
      %198 = vmatmul.f32.gmra.mxu0 %v124
      %v199 = vpop.f32.mrf.mxu0
      %v200 = vadd.f32 0.0, %v199
      %201 = vmatmul.f32.gmra.mxu0 %v125
      %v202 = vpop.f32.mrf.mxu0
      %v203 = vadd.f32 0.0, %v202
      %204 = vmatmul.f32.gmra.mxu0 %v126
      %v205 = vpop.f32.mrf.mxu0
      %v206 = vadd.f32 0.0, %v205
      %207 = vdwg.mxu0
      %v208 = vadd.f32 %v95, %v161
      %v209 = vadd.f32 %v96, %v164
      %v210 = vadd.f32 %v97, %v167
      %v211 = vadd.f32 %v98, %v170
      %v212 = vadd.f32 %v99, %v173
      %v213 = vadd.f32 %v100, %v176
      %v214 = vadd.f32 %v101, %v179
      %v215 = vadd.f32 %v102, %v182
      %v216 = vadd.f32 %v103, %v185
      %v217 = vadd.f32 %v104, %v188
      %v218 = vadd.f32 %v105, %v191
      %v219 = vadd.f32 %v106, %v194
      %v220 = vadd.f32 %v107, %v197
      %v221 = vadd.f32 %v108, %v200
      %v222 = vadd.f32 %v109, %v203
      %v223 = vadd.f32 %v110, %v206
      %224 = vst [vmem:[#allocation2] sm:$0xff] %v208
      %225 = vst [vmem:[#allocation2 + $0x8] sm:$0xff] %v209
      %226 = vst [vmem:[#allocation2 + $0x10] sm:$0xff] %v210
      %227 = vst [vmem:[#allocation2 + $0x18] sm:$0xff] %v211
      %228 = vst [vmem:[#allocation2 + $0x20] sm:$0xff] %v212
      %229 = vst [vmem:[#allocation2 + $0x28] sm:$0xff] %v213
      %230 = vst [vmem:[#allocation2 + $0x30] sm:$0xff] %v214
      %231 = vst [vmem:[#allocation2 + $0x38] sm:$0xff] %v215
      %232 = vst [vmem:[#allocation2 + $0x40] sm:$0xff] %v216
      %233 = vst [vmem:[#allocation2 + $0x48] sm:$0xff] %v217
      %234 = vst [vmem:[#allocation2 + $0x50] sm:$0xff] %v218
      %235 = vst [vmem:[#allocation2 + $0x58] sm:$0xff] %v219
      %236 = vst [vmem:[#allocation2 + $0x60] sm:$0xff] %v220
      %237 = vst [vmem:[#allocation2 + $0x68] sm:$0xff] %v221
      %238 = vst [vmem:[#allocation2 + $0x70] sm:$0xff] %v222
      %239 = vst [vmem:[#allocation2 + $0x78] sm:$0xff] %v223
    $region37: #{tpu_custom_call.1} parent=1 // pred_fallthru
      _
    // Predicated region
    $region38: #{tpu_custom_call.1} parent=1 // pred_check
      %p240 = pneg %p67
    $region39: #{tpu_custom_call.1} parent=1 // pred_check_branch
      %242 = sbr.rel (%p240) target = $region41
    $region40: #{tpu_custom_call.1} parent=1 // pred_region
      %v243 = vld [vmem:[#allocation2] sm:$0xff]
      %v244 = vld [vmem:[#allocation2 + $0x8] sm:$0xff]
      %v245 = vld [vmem:[#allocation2 + $0x10] sm:$0xff]
      %v246 = vld [vmem:[#allocation2 + $0x18] sm:$0xff]
      %v247 = vld [vmem:[#allocation2 + $0x20] sm:$0xff]
      %v248 = vld [vmem:[#allocation2 + $0x28] sm:$0xff]
      %v249 = vld [vmem:[#allocation2 + $0x30] sm:$0xff]
      %v250 = vld [vmem:[#allocation2 + $0x38] sm:$0xff]
      %v251 = vld [vmem:[#allocation2 + $0x40] sm:$0xff]
      %v252 = vld [vmem:[#allocation2 + $0x48] sm:$0xff]
      %v253 = vld [vmem:[#allocation2 + $0x50] sm:$0xff]
      %v254 = vld [vmem:[#allocation2 + $0x58] sm:$0xff]
      %v255 = vld [vmem:[#allocation2 + $0x60] sm:$0xff]
      %v256 = vld [vmem:[#allocation2 + $0x68] sm:$0xff]
      %v257 = vld [vmem:[#allocation2 + $0x70] sm:$0xff]
      %v258 = vld [vmem:[#allocation2 + $0x78] sm:$0xff]
      %v259 = vld [vmem:[#allocation10] sm:$0xff]
      %v260 = vld [vmem:[#allocation10 + $0x8] sm:$0xff]
      %v261 = vld [vmem:[#allocation10 + $0x10] sm:$0xff]
      %v262 = vld [vmem:[#allocation10 + $0x18] sm:$0xff]
      %v263 = vld [vmem:[#allocation10 + $0x20] sm:$0xff]
      %v264 = vld [vmem:[#allocation10 + $0x28] sm:$0xff]
      %v265 = vld [vmem:[#allocation10 + $0x30] sm:$0xff]
      %v266 = vld [vmem:[#allocation10 + $0x38] sm:$0xff]
      %v267 = vld [vmem:[#allocation10 + $0x40] sm:$0xff]
      %v268 = vld [vmem:[#allocation10 + $0x48] sm:$0xff]
      %v269 = vld [vmem:[#allocation10 + $0x50] sm:$0xff]
      %v270 = vld [vmem:[#allocation10 + $0x58] sm:$0xff]
      %v271 = vld [vmem:[#allocation10 + $0x60] sm:$0xff]
      %v272 = vld [vmem:[#allocation10 + $0x68] sm:$0xff]
      %v273 = vld [vmem:[#allocation10 + $0x70] sm:$0xff]
      %v274 = vld [vmem:[#allocation10 + $0x78] sm:$0xff]
      %v275 = vld [vmem:[%s4] sm:$0x1]
      %v277 = vperm.slane %v275, 0
      %279 = vmatpush.msra.mxu0 %v274
      %280 = vmatpush.msra.mxu0 %v273
      %281 = vmatpush.msra.mxu0 %v272
      %282 = vmatpush.msra.mxu0 %v271
      %283 = vmatpush.msra.mxu0 %v270
      %284 = vmatpush.msra.mxu0 %v269
      %285 = vmatpush.msra.mxu0 %v268
      %286 = vmatpush.msra.mxu0 %v267
      %287 = vmatpush.msra.mxu0 %v266
      %288 = vmatpush.msra.mxu0 %v265
      %289 = vmatpush.msra.mxu0 %v264
      %290 = vmatpush.msra.mxu0 %v263
      %291 = vmatpush.msra.mxu0 %v262
      %292 = vmatpush.msra.mxu0 %v261
      %293 = vmatpush.msra.mxu0 %v260
      %294 = vmatpush.msra.mxu0 %v259
      %295 = vmatmul.f32.gmra.mxu0 %v243
      %v296 = vpop.f32.mrf.mxu0
      %v297 = vadd.f32 %v277, %v296
      %298 = vmatmul.f32.gmra.mxu0 %v244
      %v299 = vpop.f32.mrf.mxu0
      %v300 = vadd.f32 %v277, %v299
      %301 = vmatmul.f32.gmra.mxu0 %v245
      %v302 = vpop.f32.mrf.mxu0
      %v303 = vadd.f32 %v277, %v302
      %304 = vmatmul.f32.gmra.mxu0 %v246
      %v305 = vpop.f32.mrf.mxu0
      %v306 = vadd.f32 %v277, %v305
      %307 = vmatmul.f32.gmra.mxu0 %v247
      %v308 = vpop.f32.mrf.mxu0
      %v309 = vadd.f32 %v277, %v308
      %310 = vmatmul.f32.gmra.mxu0 %v248
      %v311 = vpop.f32.mrf.mxu0
      %v312 = vadd.f32 %v277, %v311
      %313 = vmatmul.f32.gmra.mxu0 %v249
      %v314 = vpop.f32.mrf.mxu0
      %v315 = vadd.f32 %v277, %v314
      %316 = vmatmul.f32.gmra.mxu0 %v250
      %v317 = vpop.f32.mrf.mxu0
      %v318 = vadd.f32 %v277, %v317
      %319 = vmatmul.f32.gmra.mxu0 %v251
      %v320 = vpop.f32.mrf.mxu0
      %v321 = vadd.f32 %v277, %v320
      %322 = vmatmul.f32.gmra.mxu0 %v252
      %v323 = vpop.f32.mrf.mxu0
      %v324 = vadd.f32 %v277, %v323
      %325 = vmatmul.f32.gmra.mxu0 %v253
      %v326 = vpop.f32.mrf.mxu0
      %v327 = vadd.f32 %v277, %v326
      %328 = vmatmul.f32.gmra.mxu0 %v254
      %v329 = vpop.f32.mrf.mxu0
      %v330 = vadd.f32 %v277, %v329
      %331 = vmatmul.f32.gmra.mxu0 %v255
      %v332 = vpop.f32.mrf.mxu0
      %v333 = vadd.f32 %v277, %v332
      %334 = vmatmul.f32.gmra.mxu0 %v256
      %v335 = vpop.f32.mrf.mxu0
      %v336 = vadd.f32 %v277, %v335
      %337 = vmatmul.f32.gmra.mxu0 %v257
      %v338 = vpop.f32.mrf.mxu0
      %v339 = vadd.f32 %v277, %v338
      %340 = vmatmul.f32.gmra.mxu0 %v258
      %v341 = vpop.f32.mrf.mxu0
      %v342 = vadd.f32 %v277, %v341
      %343 = vdwg.mxu0
      %344 = vst [vmem:[#allocation11] sm:$0xff] %v297
      %345 = vst [vmem:[#allocation11 + $0x8] sm:$0xff] %v300
      %346 = vst [vmem:[#allocation11 + $0x10] sm:$0xff] %v303
      %347 = vst [vmem:[#allocation11 + $0x18] sm:$0xff] %v306
      %348 = vst [vmem:[#allocation11 + $0x20] sm:$0xff] %v309
      %349 = vst [vmem:[#allocation11 + $0x28] sm:$0xff] %v312
      %350 = vst [vmem:[#allocation11 + $0x30] sm:$0xff] %v315
      %351 = vst [vmem:[#allocation11 + $0x38] sm:$0xff] %v318
      %352 = vst [vmem:[#allocation11 + $0x40] sm:$0xff] %v321
      %353 = vst [vmem:[#allocation11 + $0x48] sm:$0xff] %v324
      %354 = vst [vmem:[#allocation11 + $0x50] sm:$0xff] %v327
      %355 = vst [vmem:[#allocation11 + $0x58] sm:$0xff] %v330
      %356 = vst [vmem:[#allocation11 + $0x60] sm:$0xff] %v333
      %357 = vst [vmem:[#allocation11 + $0x68] sm:$0xff] %v336
      %358 = vst [vmem:[#allocation11 + $0x70] sm:$0xff] %v339
      %359 = vst [vmem:[#allocation11 + $0x78] sm:$0xff] %v342
    $region41: #{tpu_custom_call.1} parent=1 // pred_fallthru
      _
    // Predicated region
    $region42: #{tpu_custom_call.1} parent=1 // pred_check
      _
    $region43: #{tpu_custom_call.1} parent=1 // pred_check_branch
      %361 = sbr.rel (0) target = $region45
    $region44: #{tpu_custom_call.1} parent=1 // pred_region
      %363 = vsyncadd [#allocation7], 0
      %s364 = sshll.u32 [#allocation11], 4
      %s365 = int_to_ptr.vmem [resolvable:$true] %s364
      %s366 = sshll.u32 %s5, 4
      %s367 = int_to_ptr.hbm [resolvable:$true] %s366
      %372 = dma.vmem_to_hbm [thread:$0]  %s365, 2048, %s367, [#allocation7], 128, 128, 8
    $region45: #{tpu_custom_call.1} parent=1 // pred_fallthru
      _
    // Predicated region
    $region46: #{tpu_custom_call.1} parent=1 // pred_check
      _
    $region47: #{tpu_custom_call.1} parent=1 // pred_check_branch
      %374 = sbr.rel (0) target = $region49
    $region48: #{tpu_custom_call.1} parent=1 // pred_region
      %376 = dma.done [#allocation7], 2048
    $region49: #{tpu_custom_call.1} parent=1 // pred_fallthru
      _
    %377 = vsyncpa [#allocation6], 1
    %378 = vsyncpa [#allocation9], 1
    %379 = vsyncpa [#allocation7], 1

</llo_original>
